<compile_context>
chip_gen: v5e
topology: v5e:2x2
jax: 0.10.0
libtpu: 0.0.40
codegen_flags: <defaults>
</compile_context>

<pallas_src>
import jax
import jax.numpy as jnp
from jax import lax
from jax.experimental import pallas as pl
from jax.experimental.pallas import tpu as pltpu


def _make_quality_kernel(q_blk, t_hw, hw, need_mask):
    """Builds the per-query mask-quality reduction kernel.

    Grid = (batch, q_blocks, hw_tiles); hw is the sequential reduction axis.
      mask_ref : (1, q_blk, t_hw)  one lane-dense tile of mask logits (bf16/f32)
      qual_ref : (1, q_blk, 1)     per-query mask quality (f32)
      num_acc/den_acc: (q_blk, 128) f32 lane-blocked accumulators
    """
    n_seg = t_hw // 128

    def kernel(mask_ref, qual_ref, num_acc, den_acc):
        t = pl.program_id(2)

        @pl.when(t == 0)
        def _():
            num_acc[...] = jnp.zeros_like(num_acc)
            den_acc[...] = jnp.zeros_like(den_acc)

        # Keep the elementwise chain in the input dtype (bf16 on v6e/v7x).
        m = mask_ref[0]                                          # (q_blk, t_hw)
        if need_mask:
            # Mask lanes past the true spatial extent of this tile (replaces
            # the old host-side jnp.pad).  -1.0 -> binary=0, finite sigmoid.
            rem = hw - t * t_hw
            lane = lax.broadcasted_iota(jnp.int32, (q_blk, t_hw), 1)
            m = jnp.where(lane < rem, m, jnp.asarray(-1.0, m.dtype))

        binary = (m > 0).astype(m.dtype)
        half = jnp.asarray(0.5, m.dtype)
        sig = half + half * jnp.tanh(half * m)                   # 1 EUP push / elem
        num_t = sig * binary

        # Lane-blocked partial sums: 128-wide VPU adds into f32, no per-step
        # cross-lane XLU reduce, no full-tile f32 materialization.
        np_ = num_t[:, 0:128].astype(jnp.float32)
        dp_ = binary[:, 0:128].astype(jnp.float32)
        for s in range(1, n_seg):
            np_ = np_ + num_t[:, s * 128:(s + 1) * 128].astype(jnp.float32)
            dp_ = dp_ + binary[:, s * 128:(s + 1) * 128].astype(jnp.float32)
        num_acc[...] += np_
        den_acc[...] += dp_

        @pl.when(t == pl.num_programs(2) - 1)
        def _():
            # Single cross-lane reduction per (b, q) block, in the epilogue.
            num = jnp.sum(num_acc[...], axis=-1, keepdims=True)
            den = jnp.sum(den_acc[...], axis=-1, keepdims=True)
            qual_ref[0] = num / (den + 1e-6)

    return kernel


def _mask_quality(mask_flat, *, tile_hw, q_tile):
    """Pallas pass: per-query mask quality over the flattened spatial axis."""
    B, Q, HW = mask_flat.shape

    # Lane-dense spatial tile: multiple of 128, capped at round_up(HW, 128).
    hw_pad = pl.cdiv(HW, 128) * 128
    t_hw = max(128, (int(tile_hw) // 128) * 128)
    t_hw = min(t_hw, hw_pad)
    n_hw = pl.cdiv(HW, t_hw)
    need_mask = (HW % t_hw) != 0          # tail (or sole) tile has invalid lanes

    # Query tiling: full Q by default; for B == 1 split Q across a 'parallel'
    # grid axis so v7x megacore uses both TensorCores.
    if q_tile is None:
        q_tile = ((pl.cdiv(Q, 2) + 7) // 8) * 8 if (B == 1 and Q > 8) else Q
    q_blk = min(int(q_tile), Q)
    if q_blk < Q:
        q_blk = max(8, (q_blk // 8) * 8)   # sublane-aligned partial-Q blocks
    n_q = pl.cdiv(Q, q_blk)

    kernel = _make_quality_kernel(q_blk, t_hw, HW, need_mask)

    qual = pl.pallas_call(
        kernel,
        out_shape=jax.ShapeDtypeStruct((B, Q, 1), jnp.float32),
        grid_spec=pltpu.PrefetchScalarGridSpec(
            num_scalar_prefetch=0,
            grid=(B, n_q, n_hw),
            in_specs=[
                pl.BlockSpec((1, q_blk, t_hw), lambda b, q, t: (b, q, t)),
            ],
            out_specs=pl.BlockSpec((1, q_blk, 1), lambda b, q, t: (b, q, 0)),
            scratch_shapes=[
                pltpu.VMEM((q_blk, 128), jnp.float32),   # numerator accumulator
                pltpu.VMEM((q_blk, 128), jnp.float32),   # denominator accumulator
            ],
        ),
        compiler_params=pltpu.CompilerParams(
            dimension_semantics=("parallel", "parallel", "arbitrary"),
            vmem_limit_bytes=40 * 1024 * 1024,
        ),
    )(mask_flat)
    return qual[..., 0]                                   # (B, Q)


def cis_instance_inference(mask_cls, mask_pred, test_topk_per_image=10,
                           tile_hw=8192, q_tile=None, mask_dtype=jnp.float32):
    """Reproduces CISInference -> model forward -> instance_inference per image.

    mask_cls : [B, Q, C+1] float32 class logits.
    mask_pred: [B, Q, H, W] mask logits (bf16 recommended: halves the HBM read).
    Returns (scores [B,k], pred_classes [B,k] int32, pred_masks [B,k,H,W]).
    mask_dtype=jnp.bool_ (or uint8) cuts the binary-mask write 4x if the
    consumer allows; float32 default matches the PyTorch semantics.
    """
    B, Q, C1 = mask_cls.shape
    C = C1 - 1
    _, _, H, W = mask_pred.shape
    HW = H * W

    # Heavy, bandwidth-bound part: per-query mask quality (Pallas kernel).
    quality = _mask_quality(mask_pred.reshape(B, Q, HW),
                            tile_hw=tile_hw, q_tile=q_tile)       # (B, Q)

    # Tiny class softmax stays in plain JAX (Q x (C+1) is a few KB).
    probs = jax.nn.softmax(mask_cls.astype(jnp.float32), axis=-1)
    scores_all = probs[..., :C]                                   # drop void class

    k = test_topk_per_image

    def per_image(sc, ql, mp):
        # sc: (Q, C) class scores, ql: (Q,) quality, mp: (Q, H, W) mask logits
        flat = sc.reshape(Q * C)                    # row-major: idx = q*C + c
        top_scores, top_idx = jax.lax.top_k(flat, k)
        labels = (top_idx % C).astype(jnp.int32)
        qidx = top_idx // C
        # Only the k selected masks are materialized / thresholded.
        pred_masks = (mp[qidx] > 0).astype(mask_dtype)            # (k, H, W)
        final_scores = top_scores * ql[qidx]
        return final_scores, labels, pred_masks

    return jax.vmap(per_image)(scores_all, quality, mask_pred)


def _reference(mask_cls, mask_pred, k):
    # Pure-JAX reference of the same instance_inference semantics (f32 math).
    B, Q, C1 = mask_cls.shape
    C = C1 - 1
    probs = jax.nn.softmax(mask_cls.astype(jnp.float32), axis=-1)[..., :C]

    def per_image(sc, mp):
        flat = sc.reshape(Q * C)
        top_scores, top_idx = jax.lax.top_k(flat, k)
        labels = (top_idx % C).astype(jnp.int32)
        qidx = top_idx // C
        m = mp[qidx].astype(jnp.float32)            # (k, H, W)
        binary = (m > 0).astype(jnp.float32)
        sig = jax.nn.sigmoid(m)
        qual = (sig * binary).sum((1, 2)) / (binary.sum((1, 2)) + 1e-6)
        return top_scores * qual, labels, binary

    return jax.vmap(per_image)(probs, mask_pred)


if __name__ == "__main__":
    key = jax.random.PRNGKey(0)
    # H*W = 320 is NOT a multiple of the 128-lane tile -> exercises the
    # in-kernel tail-tile masking path (the jnp.pad replacement).
    B, Q, H, W = 2, 8, 16, 20
    labels = ["cls_a", "cls_b", "cls_c", "cls_d"]   # wrapper's `labels` -> num_classes
    num_classes = len(labels)
    test_topk_per_image = 10

    k1, k2 = jax.random.split(key)
    mask_cls = jax.random.normal(k1, (B, Q, num_classes + 1), dtype=jnp.float32)
    # bf16 mask logits (typical TPU inference dtype): halves the dominant HBM
    # read and lets the kernel run its elementwise chain in bf16.
    mask_pred = (jax.random.normal(k2, (B, Q, H, W), dtype=jnp.float32) * 2.0
                 ).astype(jnp.bfloat16)

    # Small tile_hw so the demo exercises multi-tile accumulation (3 spatial
    # tiles per image, last one partial).
    scores, pred_classes, pred_masks = cis_instance_inference(
        mask_cls, mask_pred, test_topk_per_image, tile_hw=128
    )
    jax.block_until_ready((scores, pred_classes, pred_masks))

    ref_scores, ref_classes, ref_masks = _reference(
        mask_cls, mask_pred, test_topk_per_image
    )

    # bf16 in-kernel sigmoid perturbs the quality term at the ~1e-3 level;
    # class picks and binary masks are bit-identical.
    assert jnp.allclose(scores, ref_scores, atol=1e-2, rtol=1e-2), (
        float(jnp.max(jnp.abs(scores - ref_scores))))
    assert jnp.array_equal(pred_classes, ref_classes)
    assert jnp.array_equal(pred_masks, ref_masks)

    print("KERNEL_OK")
</pallas_src>

<mosaic_0001>
module attributes {stable_mosaic.version = 11 : i64} {
  func.func @kernel(%arg0: i32, %arg1: i32, %arg2: i32, %arg3: memref<1x8x128xbf16, #tpu.memory_space<vmem>>, %arg4: memref<1x8x1xf32, #tpu.memory_space<vmem>>, %arg5: memref<8x128xf32, #tpu.memory_space<vmem>>, %arg6: memref<8x128xf32, #tpu.memory_space<vmem>>) attributes {dimension_semantics = [#tpu.dimension_semantics<parallel>, #tpu.dimension_semantics<parallel>, #tpu.dimension_semantics<arbitrary>], iteration_bounds = array<i64: 2, 1, 3>, scalar_prefetch = 0 : i64, scratch_operands = 2 : i64, tpu.core_type = #tpu.core_type<tc>, window_params = [{transform_indices = @transform_0, window_bounds = array<i64: 1, 8, 128>}, {transform_indices = @transform_1, window_bounds = array<i64: 1, 8, 1>}]} {
    %c0_i32 = arith.constant 0 : i32
    %0 = arith.cmpi eq, %arg2, %c0_i32 : i32
    %1 = arith.extui %0 : i1 to i32
    %c0_i32_0 = arith.constant 0 : i32
    %2 = arith.cmpi ne, %1, %c0_i32_0 : i32
    scf.if %2 {
      %cst_16 = arith.constant 0.000000e+00 : f32
      %36 = vector.broadcast %cst_16 : f32 to vector<8x128xf32>
      %c0_17 = arith.constant 0 : index
      %c0_18 = arith.constant 0 : index
      %37 = vector.load %arg5[%c0_17, %c0_18] : memref<8x128xf32, #tpu.memory_space<vmem>>, vector<8x128xf32>
      tpu.vector_store %arg5[%c0_17, %c0_18], %36 {strides = array<i32>} : memref<8x128xf32, #tpu.memory_space<vmem>>, vector<8x128xf32>,
      %cst_19 = arith.constant 0.000000e+00 : f32
      %38 = vector.broadcast %cst_19 : f32 to vector<8x128xf32>
      %c0_20 = arith.constant 0 : index
      %c0_21 = arith.constant 0 : index
      %39 = vector.load %arg6[%c0_20, %c0_21] : memref<8x128xf32, #tpu.memory_space<vmem>>, vector<8x128xf32>
      tpu.vector_store %arg6[%c0_20, %c0_21], %38 {strides = array<i32>} : memref<8x128xf32, #tpu.memory_space<vmem>>, vector<8x128xf32>,
    } else {
    }
    %c0 = arith.constant 0 : index
    %c0_1 = arith.constant 0 : index
    %c0_2 = arith.constant 0 : index
    %3 = vector.load %arg3[%c0, %c0_1, %c0_2] : memref<1x8x128xbf16, #tpu.memory_space<vmem>>, vector<1x8x128xbf16>
    %4 = vector.shape_cast %3 : vector<1x8x128xbf16> to vector<8x128xbf16>
    %c128_i32 = arith.constant 128 : i32
    %5 = arith.muli %arg2, %c128_i32 : i32
    %c320_i32 = arith.constant 320 : i32
    %6 = arith.subi %c320_i32, %5 : i32
    %7 = tpu.iota {dimensions = array<i32: 1>} : vector<8x128xi32>
    %8 = vector.broadcast %6 : i32 to vector<8x128xi32>
    %9 = arith.cmpi slt, %7, %8 : vector<8x128xi32>
    %cst = arith.constant -1.000000e+00 : bf16
    %10 = vector.broadcast %cst : bf16 to vector<8x128xbf16>
    %11 = arith.select %9, %4, %10 : vector<8x128xi1>, vector<8x128xbf16>
    %cst_3 = arith.constant 0.000000e+00 : bf16
    %12 = vector.broadcast %cst_3 : bf16 to vector<8x128xbf16>
    %13 = arith.cmpf ogt, %11, %12 : vector<8x128xbf16>
    %14 = arith.extui %13 : vector<8x128xi1> to vector<8x128xi32>
    %15 = arith.sitofp %14 : vector<8x128xi32> to vector<8x128xf32>
    %16 = arith.truncf %15 : vector<8x128xf32> to vector<8x128xbf16>
    %cst_4 = arith.constant 5.000000e-01 : bf16
    %17 = vector.broadcast %cst_4 : bf16 to vector<8x128xbf16>
    %18 = arith.mulf %17, %11 : vector<8x128xbf16>
    %19 = math.tanh %18 : vector<8x128xbf16>
    %cst_5 = arith.constant 5.000000e-01 : bf16
    %20 = vector.broadcast %cst_5 : bf16 to vector<8x128xbf16>
    %21 = arith.mulf %20, %19 : vector<8x128xbf16>
    %cst_6 = arith.constant 5.000000e-01 : bf16
    %22 = vector.broadcast %cst_6 : bf16 to vector<8x128xbf16>
    %23 = arith.addf %22, %21 : vector<8x128xbf16>
    %24 = arith.mulf %23, %16 : vector<8x128xbf16>
    %25 = arith.extf %24 : vector<8x128xbf16> to vector<8x128xf32>
    %26 = arith.extf %16 : vector<8x128xbf16> to vector<8x128xf32>
    %c0_7 = arith.constant 0 : index
    %c0_8 = arith.constant 0 : index
    %27 = vector.load %arg5[%c0_7, %c0_8] : memref<8x128xf32, #tpu.memory_space<vmem>>, vector<8x128xf32>
    %28 = arith.addf %27, %25 : vector<8x128xf32>
    %c0_9 = arith.constant 0 : index
    %c0_10 = arith.constant 0 : index
    %29 = vector.load %arg5[%c0_9, %c0_10] : memref<8x128xf32, #tpu.memory_space<vmem>>, vector<8x128xf32>
    tpu.vector_store %arg5[%c0_9, %c0_10], %28 {strides = array<i32>} : memref<8x128xf32, #tpu.memory_space<vmem>>, vector<8x128xf32>,
    %c0_11 = arith.constant 0 : index
    %c0_12 = arith.constant 0 : index
    %30 = vector.load %arg6[%c0_11, %c0_12] : memref<8x128xf32, #tpu.memory_space<vmem>>, vector<8x128xf32>
    %31 = arith.addf %30, %26 : vector<8x128xf32>
    %c0_13 = arith.constant 0 : index
    %c0_14 = arith.constant 0 : index
    %32 = vector.load %arg6[%c0_13, %c0_14] : memref<8x128xf32, #tpu.memory_space<vmem>>, vector<8x128xf32>
    tpu.vector_store %arg6[%c0_13, %c0_14], %31 {strides = array<i32>} : memref<8x128xf32, #tpu.memory_space<vmem>>, vector<8x128xf32>,
    %c2_i32 = arith.constant 2 : i32
    %33 = arith.cmpi eq, %arg2, %c2_i32 : i32
    %34 = arith.extui %33 : i1 to i32
    %c0_i32_15 = arith.constant 0 : i32
    %35 = arith.cmpi ne, %34, %c0_i32_15 : i32
    scf.if %35 {
      %c0_16 = arith.constant 0 : index
      %c0_17 = arith.constant 0 : index
      %36 = vector.load %arg5[%c0_16, %c0_17] : memref<8x128xf32, #tpu.memory_space<vmem>>, vector<8x128xf32>
      %cst_18 = arith.constant dense<0.000000e+00> : vector<8xf32>
      %37 = vector.multi_reduction <add>, %36, %cst_18 [1] : vector<8x128xf32> to vector<8xf32>
      %38 = vector.shape_cast %37 : vector<8xf32> to vector<8x1xf32>
      %c0_19 = arith.constant 0 : index
      %c0_20 = arith.constant 0 : index
      %39 = vector.load %arg6[%c0_19, %c0_20] : memref<8x128xf32, #tpu.memory_space<vmem>>, vector<8x128xf32>
      %cst_21 = arith.constant dense<0.000000e+00> : vector<8xf32>
      %40 = vector.multi_reduction <add>, %39, %cst_21 [1] : vector<8x128xf32> to vector<8xf32>
      %41 = vector.shape_cast %40 : vector<8xf32> to vector<8x1xf32>
      %cst_22 = arith.constant 9.99999997E-7 : f32
      %42 = vector.broadcast %cst_22 : f32 to vector<8x1xf32>
      %43 = arith.addf %41, %42 : vector<8x1xf32>
      %44 = arith.divf %38, %43 : vector<8x1xf32>
      %c0_23 = arith.constant 0 : index
      %c0_24 = arith.constant 0 : index
      %c0_25 = arith.constant 0 : index
      %45 = vector.load %arg4[%c0_23, %c0_24, %c0_25] : memref<1x8x1xf32, #tpu.memory_space<vmem>>, vector<1x8x1xf32>
      %46 = vector.shape_cast %45 : vector<1x8x1xf32> to vector<8x1xf32>
      %47 = vector.shape_cast %44 : vector<8x1xf32> to vector<1x8x1xf32>
      tpu.vector_store %arg4[%c0_23, %c0_24, %c0_25], %47 {strides = array<i32>} : memref<1x8x1xf32, #tpu.memory_space<vmem>>, vector<1x8x1xf32>,
    } else {
    }
    return
  }
  func.func @transform_0(%arg0: i32, %arg1: i32, %arg2: i32) -> (i32, i32, i32) {
    %c0_i32 = arith.constant 0 : i32
    return %arg0, %arg1, %arg2 : i32, i32, i32
  }
  func.func @transform_1(%arg0: i32, %arg1: i32, %arg2: i32) -> (i32, i32, i32) {
    %c0_i32 = arith.constant 0 : i32
    %c0_i32_0 = arith.constant 0 : i32
    return %arg0, %arg1, %c0_i32 : i32, i32, i32
  }
}

</mosaic_0001>

<llo_original>
// kernel: tpu_custom_call.1
$region0: #{tpu_custom_call.1}
  #allocation0 [shape = 'u32[]', space=smem, size = 0x4, offset = 0x4, fixed_abs, tag = 'smem constant byte address 0x4 - core index']
  #allocation1 [shape = 'u32[72,128]{1,0:T(1,128)}', space=vmem, size = 0x9000, scoped, tag = 'internal scratch']
  #allocation2 [shape = 'f32[8,128]{1,0:T(8,128)}', space=vmem, size = 0x1000, scoped, tag = 'scratch operand']
  #allocation3 [shape = 'f32[8,128]{1,0:T(8,128)}', space=vmem, size = 0x1000, scoped, tag = 'scratch operand']
  %s0 = inlined_call_operand.hbm [shape: bf16[2,8,320], index: 0, kind: input, shape index: {}]
  %s1 = inlined_call_operand.vmem [shape: f32[2,8,1], index: 1, kind: output, shape index: {}]
  %s2 = sld [smem:[#allocation0]]
  $region49: #{tpu_custom_call.1} parent=0
    _
  %s4 = ssub.s32 1, %s2
  %s5 = scalar_select 0, %s4, %s2
  $region1: #{tpu_custom_call.1} parent=0
    #allocation4 [shape = 'u8[4096]{0}', space=vmem, size = 0x1000, scoped, tag = 'input window, operand 0']
    #allocation5 [shape = 's32[2]{0}', space=sflag, size = 0x8, scoped, tag = 'scoped memory for tpu_custom_call.1']
    %6 = vsyncpa [#allocation5], 0
    %s7 = scalar_lea.sflag [#allocation5], 1
    %8 = vsyncpa %s7, 0
    loop: start=0, step=1, limit=8
    $region2: #{tpu_custom_call.1} parent=1 // loop_pre_header
      _
    $region3: #{tpu_custom_call.1} parent=1 // loop_header
      %s10 = sphi 0, %s14
      %p11 = scmp.ge.s32.totalorder %s10, 8
      %s17 = sphi 0, %s36
      %s18 = sphi 0, %s32
      %s19 = sphi 0, %s28
      %s20 = sphi 0, %s17
      %s21 = sphi 0, %s18
      %s22 = sphi 0, %s19
      %s23 = sphi 0, %s20
      %s24 = sphi 0, %s21
      %s25 = sphi 0, %s22
      %s43 = sphi 0, %s45
      %s46 = sphi 0, %s43
      %s47 = sphi 0, %s46
      %s63 = sphi 0, %s47
      %s71 = sphi 0, %s73
      %s74 = sphi 0, %s71
      %s75 = sphi 0, %s74
      %s91 = sphi 0, %s75
    $region4: #{tpu_custom_call.1} parent=1 // loop_header_branch
      %13 = sbr.rel (%p11) target = $region8
    $region5: #{tpu_custom_call.1} parent=1 // loop_body
      %s15 = ssub.s32 %s10, 1
      %s16 = ssub.s32 %s10, 2
      %s26 = sadd.s32 1, %s19
      %p27 = scmp.ge.s32.totalorder %s26, 3
      %s28 = scalar_select %p27, 0, %s26
      %s29 = sadd.s32 1, %s18
      %s30 = scalar_select %p27, %s29, %s18
      %p31 = scmp.ge.s32.totalorder %s30, 1
      %s32 = scalar_select %p31, 0, %s30
      %s33 = sadd.s32 1, %s17
      %s34 = scalar_select %p31, %s33, %s17
      %p35 = scmp.ge.s32.totalorder %s34, 2
      %s36 = scalar_select %p35, 0, %s34
      %s37 = ssub.s32 %s17, %s36
      %s38 = ssub.s32 %s18, %s32
      %s39 = sor.u32 %s37, %s38
      %s40 = ssub.s32 %s19, %s28
      %s41 = sor.u32 %s39, %s40
      %p42 = scmp.eq.s32.totalorder %s41, 0
      %s44 = sadd.s32 %s43, 1
      %s45 = scalar_select %p42, %s43, %s44
      %p48 = pneg %p42
      %p49 = scmp.eq.s32.totalorder %s10, 5
      %p50 = por %p48, %p49
      %p51 = scmp.ne.s32.totalorder %s43, %s46
      %p52 = scmp.eq.s32.totalorder %s10, 0
      %p53 = por %p51, %p52
      %p54 = scmp.ne.s32.totalorder %s43, %s46
      %p55 = scmp.eq.s32.totalorder %s15, 5
      %p56 = por %p54, %p55
      %p57 = scmp.ne.s32.totalorder %s46, %s47
      %p58 = scmp.eq.s32.totalorder %s15, 0
      %p59 = por %p57, %p58
      %p60 = scmp.ne.s32.totalorder %s46, %s47
      %p61 = scmp.eq.s32.totalorder %s16, 5
      %p62 = por %p60, %p61
      %p64 = scmp.ne.s32.totalorder %s47, %s63
      %p65 = scmp.eq.s32.totalorder %s16, 0
      %p66 = por %p64, %p65
      %s67 = ssub.s32 %s17, %s36
      %s68 = ssub.s32 %s18, %s32
      %s69 = sor.u32 %s67, %s68
      %p70 = scmp.eq.s32.totalorder %s69, 0
      %s72 = sadd.s32 %s71, 1
      %s73 = scalar_select %p70, %s71, %s72
      %p76 = pneg %p70
      %p77 = scmp.eq.s32.totalorder %s10, 5
      %p78 = por %p76, %p77
      %p79 = scmp.ne.s32.totalorder %s71, %s74
      %p80 = scmp.eq.s32.totalorder %s10, 0
      %p81 = por %p79, %p80
      %p82 = scmp.ne.s32.totalorder %s71, %s74
      %p83 = scmp.eq.s32.totalorder %s15, 5
      %p84 = por %p82, %p83
      %p85 = scmp.ne.s32.totalorder %s74, %s75
      %p86 = scmp.eq.s32.totalorder %s15, 0
      %p87 = por %p85, %p86
      %p88 = scmp.ne.s32.totalorder %s74, %s75
      %p89 = scmp.eq.s32.totalorder %s16, 5
      %p90 = por %p88, %p89
      %p92 = scmp.ne.s32.totalorder %s75, %s91
      %p93 = scmp.eq.s32.totalorder %s16, 0
      %p94 = por %p92, %p93
      %p95 = scmp.le.s32.totalorder 1, %s10
      %p96 = scmp.lt.s32.totalorder %s10, 7
      %p97 = pnand %p95, %p96
      %p98 = pneg %p97
      // Predicated region
      $region9: #{tpu_custom_call.1} parent=5 // pred_check
        _
      $region10: #{tpu_custom_call.1} parent=5 // pred_check_branch
        %100 = sbr.rel (%p97) target = $region12
      $region11: #{tpu_custom_call.1} parent=5 // pred_region
        %s101 = ssub.s32 %s10, 1
      $region12: #{tpu_custom_call.1} parent=5 // pred_fallthru
        _
      %p102 = scmp.lt.s32.totalorder %s10, 6
      // Predicated region
      $region13: #{tpu_custom_call.1} parent=5 // pred_check
        %p103 = pneg %p102
      $region14: #{tpu_custom_call.1} parent=5 // pred_check_branch
        %105 = sbr.rel (%p103) target = $region16
      $region15: #{tpu_custom_call.1} parent=5 // pred_region
        // Predicated region
        $region17: #{tpu_custom_call.1} parent=15 // pred_check
          %p106 = pneg %p53
        $region18: #{tpu_custom_call.1} parent=15 // pred_check_branch
          %108 = sbr.rel (%p106) target = $region20
        $region19: #{tpu_custom_call.1} parent=15 // pred_region
          %s109 = sand.u32 %s43, 1
          %s110 = scalar_lea.sflag [#allocation5], %s109
          %s111 = sand.u32 %s43, 1
          %s112 = smul.addr %s111, 4
          %s113 = scalar_lea.vmem [#allocation4], %s112
          %115 = vsyncadd %s110, 0
          %s116 = smul.addr %s18, 3
          %s117 = sadd.s32 %s19, %s116
          %s118 = smul.addr %s17, 3
          %s119 = sadd.s32 %s117, %s118
          %s120 = smul.addr %s119, 4
          %s121 = scalar_lea.hbm %s0, %s120
          %s123 = sshll.u32 %s121, 4
          %s124 = int_to_ptr.hbm [resolvable:$true] %s123
          %s125 = sshll.u32 %s113, 4
          %s126 = int_to_ptr.vmem [resolvable:$true] %s125
          %128 = dma.hbm_to_vmem [thread:$0]  %s124, 64, %s126, %s110
        $region20: #{tpu_custom_call.1} parent=15 // pred_fallthru
          _
      $region16: #{tpu_custom_call.1} parent=5 // pred_fallthru
        _
      %p129 = scmp.le.s32.totalorder 1, %s10
      %p130 = scmp.lt.s32.totalorder %s10, 7
      %p131 = pnand %p129, %p130
      %p132 = pneg %p131
      // Predicated region
      $region21: #{tpu_custom_call.1} parent=5 // pred_check
        _
      $region22: #{tpu_custom_call.1} parent=5 // pred_check_branch
        %134 = sbr.rel (%p131) target = $region24
      $region23: #{tpu_custom_call.1} parent=5 // pred_region
        %s135 = ssub.s32 %s10, 1
        %s136 = sand.u32 %s46, 1
        %s137 = scalar_lea.sflag [#allocation5], %s136
        %s138 = sand.u32 %s46, 1
        %s139 = smul.addr %s138, 4
        %s140 = scalar_lea.vmem [#allocation4], %s139
        // Predicated region
        $region25: #{tpu_custom_call.1} parent=23 // pred_check
          %p141 = pneg %p59
        $region26: #{tpu_custom_call.1} parent=23 // pred_check_branch
          %143 = sbr.rel (%p141) target = $region28
        $region27: #{tpu_custom_call.1} parent=23 // pred_region
          %145 = dma.done %s137, 64
        $region28: #{tpu_custom_call.1} parent=23 // pred_fallthru
          _
        %s146 = sand.u32 %s46, 1
        %s147 = scalar_lea.sflag [#allocation5], %s146
        %s148 = sand.u32 %s46, 1
        %s149 = smul.addr %s148, 4
        %s150 = scalar_lea.vmem [#allocation4], %s149
        %p151 = pneg %p59
        %p152 = pneg %p56
        %p153 = pneg %p87
        %p154 = pneg %p84
        %p155 = scmp.lt.s32.totalorder %s20, 1
        %s156 = scalar_select %p155, %s20, 1
        %p157 = scmp.lt.s32.totalorder %s21, 0
        %s158 = scalar_select %p157, %s21, 0
        %s159 = sadd.s32 %s158, %s156
        %s160 = smul.addr %s159, 8
        %s161 = scalar_lea.vmem %s1, %s160
        %p162 = scmp.lt.s32.totalorder %s20, 1
        %s163 = scalar_select %p162, %s20, 1
        %p164 = scmp.lt.s32.totalorder %s21, 0
        %s165 = scalar_select %p164, %s21, 0
        %s166 = sadd.s32 %s165, %s163
        %s167 = smul.addr %s166, 8
        %s168 = scalar_lea.vmem %s1, %s167
        %p170 = scmp.eq.s32.totalorder %s22, 0
        // Predicated region
        $region29: #{tpu_custom_call.1} parent=23 // pred_check
          %p171 = pneg %p170
        $region30: #{tpu_custom_call.1} parent=23 // pred_check_branch
          %173 = sbr.rel (%p171) target = $region32
        $region31: #{tpu_custom_call.1} parent=23 // pred_region
          %174 = vst [vmem:[#allocation2] sm:$0xff] 0.0
          %175 = vst [vmem:[#allocation3] sm:$0xff] 0.0
        $region32: #{tpu_custom_call.1} parent=23 // pred_fallthru
          _
        %v176 = vld [vmem:[%s140] sm:$0xf]
        %s177 = smul.u32 %s22, 128
        %s178 = ssub.s32 320, %s177
        %v179 = vlaneseq
        %v180 = vand.u32 %v179, 127
        %v181 = vstv %s178
        %vm182 = vcmp.lt.s32.totalorder %v180, %v181
        %vm183 = vmpackc.low %vm182, %vm182
        %v184 = vsel %vm183, %v176, 3212885888
        %v185 = vunpack.c.l.bf16 %v184
        %vm186 = vcmp.gt.f32.partialorder %v185, 0.0
        %v187 = vsel %vm186, 1, 0
        %v188 = vcvt.s32.f32 %v187
        %v189 = vpack.c.bf16 %v188, %v188
        %v190 = vmul.f32 %v185, 0.5
        %v191 = vpack.c.bf16 %v190, %v190
        %v192 = vunpack.c.l.bf16 %v191
        %v193 = vtanh.pop %v192
        %v194 = vpack.c.bf16 %v193, %v193
        %v195 = vunpack.c.l.bf16 %v194
        %v196 = vmul.f32 %v195, 0.5
        %v197 = vpack.c.bf16 %v196, %v196
        %v198 = vunpack.c.l.bf16 %v197
        %v199 = vadd.f32 %v198, 0.5
        %v200 = vpack.c.bf16 %v199, %v199
        %v201 = vunpack.c.l.bf16 %v200
        %v202 = vunpack.c.l.bf16 %v189
        %v203 = vmul.f32 %v201, %v202
        %v204 = vpack.c.bf16 %v203, %v203
        %v205 = vunpack.c.l.bf16 %v204
        %v206 = vld [vmem:[#allocation2] sm:$0xff]
        %v207 = vadd.f32 %v206, %v205
        %208 = vst [vmem:[#allocation2] sm:$0xff] %v207
        %v209 = vld [vmem:[#allocation3] sm:$0xff]
        %v210 = vadd.f32 %v209, %v202
        %211 = vst [vmem:[#allocation3] sm:$0xff] %v210
        %p212 = scmp.eq.s32.totalorder %s22, 2
        // Predicated region
        $region33: #{tpu_custom_call.1} parent=23 // pred_check
          %p213 = pneg %p212
        $region34: #{tpu_custom_call.1} parent=23 // pred_check_branch
          %215 = sbr.rel (%p213) target = $region36
        $region35: #{tpu_custom_call.1} parent=23 // pred_region
          %v216 = vld [vmem:[#allocation2] sm:$0xff]
          %217 = vadd.xlane.f32.xlu0 %v216
          %v218 = vpop.xlane.xlu0 %217
          %v219 = vld [vmem:[#allocation3] sm:$0xff]
          %220 = vadd.xlane.f32.xlu0 %v219
          %v221 = vpop.xlane.xlu0 %220
          %v222 = vadd.f32 %v221, 1e-06
          %v223 = vrcp.pop %v222
          %v224 = vmul.f32 %v222, %v223
          %v225 = vsub.f32 1.0, %v224
          %v226 = vmul.f32 %v223, %v225
          %v227 = vadd.f32 %v223, %v226
          %vm228 = vweird.f32 %v222
          %vm229 = vweird.f32 %v223
          %vm230 = vmor %vm228, %vm229
          %v231 = vsel %vm230, %v223, %v227
          %v232 = vand.u32 2147483647, %v222
          %vm233 = vcmp.eq.f32.partialorder %v232, 8.507059e+37
          %v234 = vand.u32 %v222, 2147483648
          %v235 = vor.u32 1.1754944e-38, %v234
          %v236 = vsel %vm233, %v235, %v231
          %v237 = vmul.f32 %v218, %v236
          %vm238 = vcmask 7168
          %239 = vst.msk [vmem:[%s168] sm:$0xff] %vm238, %v237
        $region36: #{tpu_custom_call.1} parent=23 // pred_fallthru
          _
        %p240 = scmp.lt.s32.totalorder %s20, 1
        %s241 = scalar_select %p240, %s20, 1
        %p242 = scmp.lt.s32.totalorder %s21, 0
        %s243 = scalar_select %p242, %s21, 0
        %s244 = sadd.s32 %s243, %s241
        %s245 = smul.addr %s244, 8
        %s246 = scalar_lea.vmem %s1, %s245
        // Predicated region
        $region37: #{tpu_custom_call.1} parent=23 // pred_check
          %p247 = pneg %p84
        $region38: #{tpu_custom_call.1} parent=23 // pred_check_branch
          %249 = sbr.rel (%p247) target = $region40
        $region39: #{tpu_custom_call.1} parent=23 // pred_region
          _
        $region40: #{tpu_custom_call.1} parent=23 // pred_fallthru
          _
      $region24: #{tpu_custom_call.1} parent=5 // pred_fallthru
        _
      %p250 = scmp.le.s32.totalorder 2, %s10
      // Predicated region
      $region41: #{tpu_custom_call.1} parent=5 // pred_check
        %p251 = pneg %p250
      $region42: #{tpu_custom_call.1} parent=5 // pred_check_branch
        %253 = sbr.rel (%p251) target = $region44
      $region43: #{tpu_custom_call.1} parent=5 // pred_region
        %s254 = ssub.s32 %s10, 2
        // Predicated region
        $region45: #{tpu_custom_call.1} parent=43 // pred_check
          %p255 = pneg %p90
        $region46: #{tpu_custom_call.1} parent=43 // pred_check_branch
          %257 = sbr.rel (%p255) target = $region48
        $region47: #{tpu_custom_call.1} parent=43 // pred_region
          %p258 = scmp.lt.s32.totalorder %s23, 1
          %s259 = scalar_select %p258, %s23, 1
          %p260 = scmp.lt.s32.totalorder %s24, 0
          %s261 = scalar_select %p260, %s24, 0
          %s262 = sadd.s32 %s261, %s259
          %s263 = smul.addr %s262, 8
          %s264 = scalar_lea.vmem %s1, %s263
        $region48: #{tpu_custom_call.1} parent=43 // pred_fallthru
          _
      $region44: #{tpu_custom_call.1} parent=5 // pred_fallthru
        _
    $region6: #{tpu_custom_call.1} parent=1 // loop_footer
      %s14 = sadd.s32 1, %s10
    $region7: #{tpu_custom_call.1} parent=1 // loop_footer_branch
      %9 = sbr.rel target = $region3
    $region8: #{tpu_custom_call.1} parent=1 // loop_exit
      _
    %265 = vsyncpa [#allocation5], 1
    %s266 = scalar_lea.sflag [#allocation5], 1
    %267 = vsyncpa %s266, 1

</llo_original>
